<compile_context>
chip_gen: v7x
topology: tpu7x:2x2x1
jax: 0.10.0
libtpu: 0.0.40
codegen_flags: <defaults>
</compile_context>

<pallas_src>
import numpy as np
import jax
import jax.numpy as jnp
from jax.experimental import pallas as pl
from jax.experimental.pallas import tpu as pltpu

# ----------------------------- hyperparameters ------------------------------
K = 2           # number of MAF flows (all share parameters, as in the reference)
D = 4           # latent dim
NFEATS = 16     # input feature dim
H_MAF = 8       # MAF conditioner (FCNN) hidden width
B = 16          # batch (single tile — grid has one step)

SLAB_W = 128    # packed-parameter slab width (lanes)
OUT_PAD = 128   # decoder output padded to 128 lanes for unmasked stores
H3 = (D - 1) * H_MAF   # packed conditioner hidden width


# ------------------------------ param packing --------------------------------
def pack_params(p):
    """Host-side (numpy) one-time packing into a single (R,128) f32 slab."""
    f32 = np.float32
    g = lambda a: np.asarray(a, dtype=f32)

    # ---- fold encoder: identity activations => single matmul + bias ----
    W = g(p['we1']); b = g(p['be1'])
    for wn, bn in (('we2', 'be2'), ('we3', 'be3'), ('we4', 'be4')):
        W = W @ g(p[wn]); b = b @ g(p[wn]) + g(p[bn])
    W_enc, B_enc = W, b                                         # (16, 8), (1, 8)

    # ---- fold decoder: single matmul + bias, lane-padded to 128 ----
    W = g(p['wd1']); b = g(p['bd1'])
    for wn, bn in (('wd2', 'bd2'), ('wd3', 'bd3'), ('wd4', 'bd4')):
        W = W @ g(p[wn]); b = b @ g(p[wn]) + g(p[bn])
    if K % 2 == 1:                       # fold pending final flip into decoder
        W = W[::-1, :]
    W_dec = np.zeros((D, OUT_PAD), f32); W_dec[:, :NFEATS] = W
    B_dec = np.zeros((1, OUT_PAD), f32); B_dec[:, :NFEATS] = b

    # ---- batched MAF conditioners (base copy, used by even-index flows) ----
    W1 = np.zeros((D, H3), f32);  B1 = np.zeros((1, H3), f32)
    W2 = np.zeros((H3, H3), f32); B2 = np.zeros((1, H3), f32)   # block diagonal
    W3 = np.zeros((H3, 2 * D), f32)                             # cols [m_0..m_3,a_0..a_3]
    B3 = np.zeros((1, 2 * D), f32)
    ip = g(p['ip'])
    B3[0, 0] = ip[0, 0]                 # dim 0 uses initial_param (zero weights)
    B3[0, D] = ip[0, 1]
    for j in range(D - 1):              # conditioner for output dim i = j+1
        s = j * H_MAF
        w1 = g(p['mw1'][j]).copy()
        w1[j + 1:, :] = 0.0             # defensively re-apply autoregressive mask
        W1[:, s:s + H_MAF] = w1
        B1[0, s:s + H_MAF] = g(p['mb1'][j])[0]
        W2[s:s + H_MAF, s:s + H_MAF] = g(p['mw2'][j])
        B2[0, s:s + H_MAF] = g(p['mb2'][j])[0]
        w3 = g(p['mw3'][j])
        W3[s:s + H_MAF, j + 1] = w3[:, 0]
        W3[s:s + H_MAF, D + j + 1] = w3[:, 1]
        b3 = g(p['mb3'][j])
        B3[0, j + 1] = b3[0, 0]
        B3[0, D + j + 1] = b3[0, 1]

    # ---- flip-folded copy (used by odd-index flows, whose carry is pre-flip):
    #      z_true = flip(carry)  =>  z_true @ W1 == carry @ W1[::-1]
    #      output m/a columns permuted so the flow output is already post-flip.
    W1f = np.ascontiguousarray(W1[::-1, :])
    perm = np.arange(D)[::-1]
    W3f = np.concatenate([W3[:, :D][:, perm], W3[:, D:][:, perm]], axis=1)
    B3f = np.concatenate([B3[:, :D][:, perm], B3[:, D:][:, perm]], axis=1)

    # ---- shared bias block: one 8-row, 128-lane tile, one bias per row ----
    bias_blk = np.zeros((8, SLAB_W), f32)
    bias_rows = {}
    for r, (name, arr) in enumerate([('bdec', B_dec), ('benc', B_enc),
                                     ('mB1', B1), ('mB2', B2),
                                     ('mB3', B3), ('mB3f', B3f)]):
        bias_blk[r, :arr.shape[1]] = arr[0]
        bias_rows[name] = (r, arr.shape[1])

    entries = [('wenc', W_enc), ('wdec', W_dec),
               ('mW1', W1), ('mW2', W2), ('mW3', W3),
               ('mW1f', W1f), ('mW3f', W3f),
               ('bias', bias_blk)]
    layout = {}
    blocks = []
    row = 0
    for name, arr in entries:
        r, c = arr.shape
        rp = -(-r // 8) * 8                        # pad rows to multiple of 8
        blk = np.zeros((rp, SLAB_W), f32)
        blk[:r, :c] = arr
        blocks.append(blk)
        layout[name] = (row, r, c)                 # static python ints
        row += rp
    b0 = layout['bias'][0]
    for name, (r, c) in bias_rows.items():
        layout[name] = (b0 + r, 1, c)
    slab = np.concatenate(blocks, axis=0)          # (120, 128) ≈ 60 KB
    return jnp.asarray(slab), layout


# --------------------------------- kernel -----------------------------------
def make_kernel(layout):
    def get(ref, name):
        r0, r, c = layout[name]
        return ref[r0:r0 + r, 0:c]                 # static slice of the slab

    def kernel(x_ref, eps_ref, p_ref, xp_ref):
        x = x_ref[...]                             # (B, NFEATS)

        # ---------------- encoder: ONE folded matmul ----------------
        enc = (jnp.dot(x, get(p_ref, 'wenc'),
                       preferred_element_type=jnp.float32)
               + get(p_ref, 'benc'))               # (B, 2D)
        mu = enc[:, :D]
        log_var = enc[:, D:2 * D]
        sigma = jnp.exp(0.5 * log_var)             # single EUP transcendental
        ev = sigma * sigma                         # == exp(log_var)
        z = mu + sigma * eps_ref[...]              # (B, D)
        kl_part = -0.5 * jnp.sum(1.0 + log_var - mu * mu - ev,
                                 axis=(0, 1), keepdims=True)       # (1, 1)

        # ---------------- K MAF flows (flip folded into params) -----
        W2 = get(p_ref, 'mW2')
        B1c = get(p_ref, 'mB1')
        B2c = get(p_ref, 'mB2')
        a_sum = jnp.zeros((B, D), jnp.float32)
        for k in range(K):
            if k % 2 == 0:
                W1 = get(p_ref, 'mW1')
                W3 = get(p_ref, 'mW3')
                B3c = get(p_ref, 'mB3')
            else:
                W1 = get(p_ref, 'mW1f')            # rows reversed
                W3 = get(p_ref, 'mW3f')            # m/a columns reversed
                B3c = get(p_ref, 'mB3f')
            h1 = jnp.tanh(jnp.dot(z, W1, preferred_element_type=jnp.float32) + B1c)
            h2 = jnp.tanh(jnp.dot(h1, W2, preferred_element_type=jnp.float32) + B2c)
            out = jnp.dot(h2, W3, preferred_element_type=jnp.float32) + B3c  # (B, 2D)
            m = out[:, :D]
            a = out[:, D:2 * D]
            z = (z - m) * jnp.exp(-a)              # lane-aligned, no flips
            a_sum = a_sum + a

        # ---------------- decoder: ONE folded matmul -----------------
        dec = (jnp.dot(z, get(p_ref, 'wdec'),
                       preferred_element_type=jnp.float32)
               + get(p_ref, 'bdec'))               # (B, OUT_PAD); cols>=NFEATS == 0

        # kl_div = sum(kl)/B - mean(sum_ladj) = (kl_part + sum(a_sum)) / B
        a_tot = jnp.sum(a_sum, axis=(0, 1), keepdims=True)          # (1, 1)
        kl = (kl_part + a_tot) * (1.0 / B)
        lane = jax.lax.broadcasted_iota(jnp.int32, (B, OUT_PAD), 1)
        # stash kl in spare lane NFEATS (exactly zero in dec) -> single output DMA
        xp_ref[...] = dec + jnp.where(lane == NFEATS, kl, 0.0)

    return kernel


# -------------------------------- wrapper ------------------------------------
def build_forward(params):
    slab, layout = pack_params(params)             # host-side, runs ONCE
    kernel = make_kernel(layout)

    call = pl.pallas_call(
        kernel,
        out_shape=jax.ShapeDtypeStruct((B, OUT_PAD), jnp.float32),
        grid_spec=pltpu.PrefetchScalarGridSpec(
            num_scalar_prefetch=0,
            grid=(1,),                             # single step: TB = B
            in_specs=[
                pl.BlockSpec((B, NFEATS), lambda i: (0, 0)),
                pl.BlockSpec((B, D), lambda i: (0, 0)),
                pl.BlockSpec(slab.shape, lambda i: (0, 0)),
            ],
            out_specs=pl.BlockSpec((B, OUT_PAD), lambda i: (0, 0)),
        ),
    )

    @jax.jit
    def forward(x, eps, slab_arg):
        xp_pad = call(x, eps, slab_arg)
        return xp_pad[:, :NFEATS], xp_pad[0, NFEATS]

    return lambda x, eps: forward(x, eps, slab)


# --------------------------- deterministic params ----------------------------
def init_params(key):
    keys = iter(jax.random.split(key, 64))

    def lin(in_d, out_d):
        w = jax.random.normal(next(keys), (in_d, out_d), jnp.float32) / jnp.sqrt(
            jnp.float32(in_d))
        b = 0.01 * jax.random.normal(next(keys), (1, out_d), jnp.float32)
        return w, b

    p = {}
    p['we1'], p['be1'] = lin(NFEATS, 50)
    p['we2'], p['be2'] = lin(50, 30)
    p['we3'], p['be3'] = lin(30, 20)
    p['we4'], p['be4'] = lin(20, 2 * D)
    p['wd1'], p['bd1'] = lin(D, 20)
    p['wd2'], p['bd2'] = lin(20, 30)
    p['wd3'], p['bd3'] = lin(30, 50)
    p['wd4'], p['bd4'] = lin(50, NFEATS)

    # MAF: initial_param ~ U(-sqrt(0.5), sqrt(0.5)); per-dim FCNN conditioners.
    p['ip'] = jax.random.uniform(next(keys), (1, 2), jnp.float32, -0.7071, 0.7071)
    p['mw1'], p['mb1'] = [], []
    p['mw2'], p['mb2'] = [], []
    p['mw3'], p['mb3'] = [], []
    for i in range(1, D):
        w1, b1 = lin(D, H_MAF)
        mask = (jnp.arange(D) < i).astype(jnp.float32)[:, None]
        p['mw1'].append(w1 * mask)      # zero inputs >= i (== Linear(i, H))
        p['mb1'].append(b1)
        w2, b2 = lin(H_MAF, H_MAF)
        p['mw2'].append(w2); p['mb2'].append(b2)
        w3, b3 = lin(H_MAF, 2)
        p['mw3'].append(w3); p['mb3'].append(b3)
    return p


# ---------------------------- pure-JAX reference -----------------------------
def reference_forward(x, eps, p):
    def act(v):  # nn.LeakyReLU(True): negative_slope = 1.0 (identity)
        return jnp.where(v >= 0, v, 1.0 * v)

    h = act(x @ p['we1'] + p['be1'])
    h = act(h @ p['we2'] + p['be2'])
    h = act(h @ p['we3'] + p['be3'])
    enc = h @ p['we4'] + p['be4']
    mu, log_var = enc[:, :D], enc[:, D:2 * D]
    sigma = jnp.exp(0.5 * log_var)
    z = mu + sigma * eps
    kl = -0.5 * jnp.sum(1.0 + log_var - mu ** 2 - jnp.exp(log_var))

    log_det = jnp.zeros((x.shape[0],), jnp.float32)
    for _ in range(K):
        zc = jnp.zeros_like(z)
        for i in range(D):
            if i == 0:
                m_i, a_i = p['ip'][0, 0], p['ip'][0, 1]
            else:
                hh = jnp.tanh(z @ p['mw1'][i - 1] + p['mb1'][i - 1])
                hh = jnp.tanh(hh @ p['mw2'][i - 1] + p['mb2'][i - 1])
                out = hh @ p['mw3'][i - 1] + p['mb3'][i - 1]
                m_i, a_i = out[:, 0], out[:, 1]
            zc = zc.at[:, i].set((z[:, i] - m_i) / jnp.exp(a_i))
            log_det = log_det - a_i
        z = jnp.flip(zc, axis=1)

    kl = kl / x.shape[0] - jnp.mean(log_det)

    h = act(z @ p['wd1'] + p['bd1'])
    h = act(h @ p['wd2'] + p['bd2'])
    h = act(h @ p['wd3'] + p['bd3'])
    x_prime = h @ p['wd4'] + p['bd4']
    return x_prime, kl


# ----------------------------------- main ------------------------------------
if __name__ == "__main__":
    key = jax.random.PRNGKey(0)
    kx, ke, kp = jax.random.split(key, 3)
    x = jax.random.normal(kx, (B, NFEATS), jnp.float32)
    eps = jax.random.normal(ke, (B, D), jnp.float32)   # replaces torch.randn_like
    params = init_params(kp)

    forward = build_forward(params)                    # packs params ONCE
    x_prime, kl_div = forward(x, eps)
    jax.block_until_ready((x_prime, kl_div))

    xp_ref, kl_ref = reference_forward(x, eps, params)
    assert jnp.allclose(x_prime, xp_ref, rtol=1e-4, atol=1e-4), "x_prime mismatch"
    assert jnp.allclose(kl_div, kl_ref, rtol=1e-4, atol=1e-4), "kl_div mismatch"

    print("KERNEL_OK")
</pallas_src>

<mosaic_0001>
module attributes {stable_mosaic.version = 11 : i64} {
  func.func @kernel(%arg0: i32, %arg1: memref<16x16xf32, #tpu.memory_space<vmem>>, %arg2: memref<16x4xf32, #tpu.memory_space<vmem>>, %arg3: memref<120x128xf32, #tpu.memory_space<vmem>>, %arg4: memref<16x128xf32, #tpu.memory_space<vmem>>) attributes {dimension_semantics = [#tpu.dimension_semantics<arbitrary>], iteration_bounds = array<i64: 1>, scalar_prefetch = 0 : i64, scratch_operands = 0 : i64, tpu.core_type = #tpu.core_type<tc>, window_params = [{pipeline_mode = #tpu.pipeline_mode<synchronous>, transform_indices = @transform_0, window_bounds = array<i64: 16, 16>}, {pipeline_mode = #tpu.pipeline_mode<synchronous>, transform_indices = @transform_1, window_bounds = array<i64: 16, 4>}, {pipeline_mode = #tpu.pipeline_mode<synchronous>, transform_indices = @transform_2, window_bounds = array<i64: 120, 128>}, {pipeline_mode = #tpu.pipeline_mode<synchronous>, transform_indices = @transform_3, window_bounds = array<i64: 16, 128>}]} {
    %c0 = arith.constant 0 : index
    %c0_0 = arith.constant 0 : index
    %0 = vector.load %arg1[%c0, %c0_0] : memref<16x16xf32, #tpu.memory_space<vmem>>, vector<16x16xf32>
    %c0_1 = arith.constant 0 : index
    %c0_2 = arith.constant 0 : index
    %1 = vector.load %arg3[%c0_1, %c0_2] : memref<120x128xf32, #tpu.memory_space<vmem>>, vector<16x8xf32>
    %cst = arith.constant dense<0.000000e+00> : vector<16x8xf32>
    %2 = tpu.matmul %0, %1, %cst {dimension_numbers = #tpu.dot_dimension_numbers<[1], [0], [0], [1], [0, 0, 1, 1], [], []>} : vector<16x16xf32>, vector<16x8xf32>, vector<16x8xf32> -> vector<16x8xf32>
    %c113 = arith.constant 113 : index
    %c0_3 = arith.constant 0 : index
    %3 = vector.load %arg3[%c113, %c0_3] : memref<120x128xf32, #tpu.memory_space<vmem>>, vector<1x8xf32>
    %4 = vector.broadcast %3 : vector<1x8xf32> to vector<16x8xf32>
    %5 = arith.addf %2, %4 : vector<16x8xf32>
    %6 = vector.extract_strided_slice %5 {offsets = [0, 0], sizes = [16, 4], strides = [1, 1]} : vector<16x8xf32> to vector<16x4xf32>
    %7 = vector.extract_strided_slice %5 {offsets = [0, 4], sizes = [16, 4], strides = [1, 1]} : vector<16x8xf32> to vector<16x4xf32>
    %cst_4 = arith.constant 5.000000e-01 : f32
    %8 = vector.broadcast %cst_4 : f32 to vector<16x4xf32>
    %9 = arith.mulf %8, %7 : vector<16x4xf32>
    %10 = math.exp %9 : vector<16x4xf32>
    %11 = arith.mulf %10, %10 : vector<16x4xf32>
    %c0_5 = arith.constant 0 : index
    %c0_6 = arith.constant 0 : index
    %12 = vector.load %arg2[%c0_5, %c0_6] : memref<16x4xf32, #tpu.memory_space<vmem>>, vector<16x4xf32>
    %13 = arith.mulf %10, %12 : vector<16x4xf32>
    %14 = arith.addf %6, %13 : vector<16x4xf32>
    %cst_7 = arith.constant 1.000000e+00 : f32
    %15 = vector.broadcast %cst_7 : f32 to vector<16x4xf32>
    %16 = arith.addf %15, %7 : vector<16x4xf32>
    %17 = arith.mulf %6, %6 : vector<16x4xf32>
    %18 = arith.subf %16, %17 : vector<16x4xf32>
    %19 = arith.subf %18, %11 : vector<16x4xf32>
    %20 = vector.shape_cast %19 : vector<16x4xf32> to vector<1x16x4xf32>
    %cst_8 = arith.constant dense<0.000000e+00> : vector<1xf32>
    %21 = vector.multi_reduction <add>, %20, %cst_8 [1, 2] : vector<1x16x4xf32> to vector<1xf32>
    %22 = vector.shape_cast %21 : vector<1xf32> to vector<1x1x1xf32>
    %23 = vector.extract %22[0, 0, 0] : f32 from vector<1x1x1xf32>
    %24 = vector.broadcast %23 : f32 to vector<1x1xf32>
    %cst_9 = arith.constant -5.000000e-01 : f32
    %25 = vector.broadcast %cst_9 : f32 to vector<1x1xf32>
    %26 = arith.mulf %25, %24 : vector<1x1xf32>
    %c32 = arith.constant 32 : index
    %c0_10 = arith.constant 0 : index
    %27 = vector.load %arg3[%c32, %c0_10] : memref<120x128xf32, #tpu.memory_space<vmem>>, vector<24x24xf32>
    %c114 = arith.constant 114 : index
    %c0_11 = arith.constant 0 : index
    %28 = vector.load %arg3[%c114, %c0_11] : memref<120x128xf32, #tpu.memory_space<vmem>>, vector<1x24xf32>
    %c115 = arith.constant 115 : index
    %c0_12 = arith.constant 0 : index
    %29 = vector.load %arg3[%c115, %c0_12] : memref<120x128xf32, #tpu.memory_space<vmem>>, vector<1x24xf32>
    %cst_13 = arith.constant 0.000000e+00 : f32
    %30 = vector.broadcast %cst_13 : f32 to vector<16x4xf32>
    %c24 = arith.constant 24 : index
    %c0_14 = arith.constant 0 : index
    %31 = vector.load %arg3[%c24, %c0_14] : memref<120x128xf32, #tpu.memory_space<vmem>>, vector<4x24xf32>
    %c56 = arith.constant 56 : index
    %c0_15 = arith.constant 0 : index
    %32 = vector.load %arg3[%c56, %c0_15] : memref<120x128xf32, #tpu.memory_space<vmem>>, vector<24x8xf32>
    %c116 = arith.constant 116 : index
    %c0_16 = arith.constant 0 : index
    %33 = vector.load %arg3[%c116, %c0_16] : memref<120x128xf32, #tpu.memory_space<vmem>>, vector<1x8xf32>
    %cst_17 = arith.constant dense<0.000000e+00> : vector<16x24xf32>
    %34 = tpu.matmul %14, %31, %cst_17 {dimension_numbers = #tpu.dot_dimension_numbers<[1], [0], [0], [1], [0, 0, 1, 1], [], []>} : vector<16x4xf32>, vector<4x24xf32>, vector<16x24xf32> -> vector<16x24xf32>
    %35 = vector.broadcast %28 : vector<1x24xf32> to vector<16x24xf32>
    %36 = arith.addf %34, %35 : vector<16x24xf32>
    %37 = math.tanh %36 : vector<16x24xf32>
    %cst_18 = arith.constant dense<0.000000e+00> : vector<16x24xf32>
    %38 = tpu.matmul %37, %27, %cst_18 {dimension_numbers = #tpu.dot_dimension_numbers<[1], [0], [0], [1], [0, 0, 1, 1], [], []>} : vector<16x24xf32>, vector<24x24xf32>, vector<16x24xf32> -> vector<16x24xf32>
    %39 = vector.broadcast %29 : vector<1x24xf32> to vector<16x24xf32>
    %40 = arith.addf %38, %39 : vector<16x24xf32>
    %41 = math.tanh %40 : vector<16x24xf32>
    %cst_19 = arith.constant dense<0.000000e+00> : vector<16x8xf32>
    %42 = tpu.matmul %41, %32, %cst_19 {dimension_numbers = #tpu.dot_dimension_numbers<[1], [0], [0], [1], [0, 0, 1, 1], [], []>} : vector<16x24xf32>, vector<24x8xf32>, vector<16x8xf32> -> vector<16x8xf32>
    %43 = vector.broadcast %33 : vector<1x8xf32> to vector<16x8xf32>
    %44 = arith.addf %42, %43 : vector<16x8xf32>
    %45 = vector.extract_strided_slice %44 {offsets = [0, 0], sizes = [16, 4], strides = [1, 1]} : vector<16x8xf32> to vector<16x4xf32>
    %46 = vector.extract_strided_slice %44 {offsets = [0, 4], sizes = [16, 4], strides = [1, 1]} : vector<16x8xf32> to vector<16x4xf32>
    %47 = arith.subf %14, %45 : vector<16x4xf32>
    %cst_20 = arith.constant 0.000000e+00 : f32
    %48 = vector.broadcast %cst_20 : f32 to vector<16x4xf32>
    %49 = arith.subf %48, %46 : vector<16x4xf32>
    %50 = math.exp %49 : vector<16x4xf32>
    %51 = arith.mulf %47, %50 : vector<16x4xf32>
    %52 = arith.addf %30, %46 : vector<16x4xf32>
    %c80 = arith.constant 80 : index
    %c0_21 = arith.constant 0 : index
    %53 = vector.load %arg3[%c80, %c0_21] : memref<120x128xf32, #tpu.memory_space<vmem>>, vector<4x24xf32>
    %c88 = arith.constant 88 : index
    %c0_22 = arith.constant 0 : index
    %54 = vector.load %arg3[%c88, %c0_22] : memref<120x128xf32, #tpu.memory_space<vmem>>, vector<24x8xf32>
    %c117 = arith.constant 117 : index
    %c0_23 = arith.constant 0 : index
    %55 = vector.load %arg3[%c117, %c0_23] : memref<120x128xf32, #tpu.memory_space<vmem>>, vector<1x8xf32>
    %cst_24 = arith.constant dense<0.000000e+00> : vector<16x24xf32>
    %56 = tpu.matmul %51, %53, %cst_24 {dimension_numbers = #tpu.dot_dimension_numbers<[1], [0], [0], [1], [0, 0, 1, 1], [], []>} : vector<16x4xf32>, vector<4x24xf32>, vector<16x24xf32> -> vector<16x24xf32>
    %57 = vector.broadcast %28 : vector<1x24xf32> to vector<16x24xf32>
    %58 = arith.addf %56, %57 : vector<16x24xf32>
    %59 = math.tanh %58 : vector<16x24xf32>
    %cst_25 = arith.constant dense<0.000000e+00> : vector<16x24xf32>
    %60 = tpu.matmul %59, %27, %cst_25 {dimension_numbers = #tpu.dot_dimension_numbers<[1], [0], [0], [1], [0, 0, 1, 1], [], []>} : vector<16x24xf32>, vector<24x24xf32>, vector<16x24xf32> -> vector<16x24xf32>
    %61 = vector.broadcast %29 : vector<1x24xf32> to vector<16x24xf32>
    %62 = arith.addf %60, %61 : vector<16x24xf32>
    %63 = math.tanh %62 : vector<16x24xf32>
    %cst_26 = arith.constant dense<0.000000e+00> : vector<16x8xf32>
    %64 = tpu.matmul %63, %54, %cst_26 {dimension_numbers = #tpu.dot_dimension_numbers<[1], [0], [0], [1], [0, 0, 1, 1], [], []>} : vector<16x24xf32>, vector<24x8xf32>, vector<16x8xf32> -> vector<16x8xf32>
    %65 = vector.broadcast %55 : vector<1x8xf32> to vector<16x8xf32>
    %66 = arith.addf %64, %65 : vector<16x8xf32>
    %67 = vector.extract_strided_slice %66 {offsets = [0, 0], sizes = [16, 4], strides = [1, 1]} : vector<16x8xf32> to vector<16x4xf32>
    %68 = vector.extract_strided_slice %66 {offsets = [0, 4], sizes = [16, 4], strides = [1, 1]} : vector<16x8xf32> to vector<16x4xf32>
    %69 = arith.subf %51, %67 : vector<16x4xf32>
    %cst_27 = arith.constant 0.000000e+00 : f32
    %70 = vector.broadcast %cst_27 : f32 to vector<16x4xf32>
    %71 = arith.subf %70, %68 : vector<16x4xf32>
    %72 = math.exp %71 : vector<16x4xf32>
    %73 = arith.mulf %69, %72 : vector<16x4xf32>
    %74 = arith.addf %52, %68 : vector<16x4xf32>
    %c16 = arith.constant 16 : index
    %c0_28 = arith.constant 0 : index
    %75 = vector.load %arg3[%c16, %c0_28] : memref<120x128xf32, #tpu.memory_space<vmem>>, vector<4x128xf32>
    %cst_29 = arith.constant dense<0.000000e+00> : vector<16x128xf32>
    %76 = tpu.matmul %73, %75, %cst_29 {dimension_numbers = #tpu.dot_dimension_numbers<[1], [0], [0], [1], [0, 0, 1, 1], [], []>} : vector<16x4xf32>, vector<4x128xf32>, vector<16x128xf32> -> vector<16x128xf32>
    %c112 = arith.constant 112 : index
    %c0_30 = arith.constant 0 : index
    %77 = vector.load %arg3[%c112, %c0_30] : memref<120x128xf32, #tpu.memory_space<vmem>>, vector<1x128xf32>
    %78 = vector.broadcast %77 : vector<1x128xf32> to vector<16x128xf32>
    %79 = arith.addf %76, %78 : vector<16x128xf32>
    %80 = vector.shape_cast %74 : vector<16x4xf32> to vector<1x16x4xf32>
    %cst_31 = arith.constant dense<0.000000e+00> : vector<1xf32>
    %81 = vector.multi_reduction <add>, %80, %cst_31 [1, 2] : vector<1x16x4xf32> to vector<1xf32>
    %82 = vector.shape_cast %81 : vector<1xf32> to vector<1x1x1xf32>
    %83 = vector.extract %82[0, 0, 0] : f32 from vector<1x1x1xf32>
    %84 = vector.broadcast %83 : f32 to vector<1x1xf32>
    %85 = arith.addf %26, %84 : vector<1x1xf32>
    %cst_32 = arith.constant 6.250000e-02 : f32
    %86 = vector.broadcast %cst_32 : f32 to vector<1x1xf32>
    %87 = arith.mulf %85, %86 : vector<1x1xf32>
    %88 = tpu.iota {dimensions = array<i32: 1>} : vector<16x128xi32>
    %c16_i32 = arith.constant 16 : i32
    %89 = vector.broadcast %c16_i32 : i32 to vector<16x128xi32>
    %90 = arith.cmpi eq, %88, %89 : vector<16x128xi32>
    %cst_33 = arith.constant 0.000000e+00 : f32
    %91 = vector.shape_cast %87 : vector<1x1xf32> to vector<1x1xf32>
    %92 = vector.broadcast %91 : vector<1x1xf32> to vector<16x128xf32>
    %93 = vector.broadcast %cst_33 : f32 to vector<16x128xf32>
    %94 = arith.select %90, %92, %93 : vector<16x128xi1>, vector<16x128xf32>
    %95 = arith.addf %79, %94 : vector<16x128xf32>
    %c0_34 = arith.constant 0 : index
    %c0_35 = arith.constant 0 : index
    %96 = vector.load %arg4[%c0_34, %c0_35] : memref<16x128xf32, #tpu.memory_space<vmem>>, vector<16x128xf32>
    tpu.vector_store %arg4[%c0_34, %c0_35], %95 {strides = array<i32>} : memref<16x128xf32, #tpu.memory_space<vmem>>, vector<16x128xf32>,
    return
  }
  func.func @transform_0(%arg0: i32) -> (i32, i32) {
    %c0_i32 = arith.constant 0 : i32
    %c0_i32_0 = arith.constant 0 : i32
    %c0_i32_1 = arith.constant 0 : i32
    return %c0_i32, %c0_i32_0 : i32, i32
  }
  func.func @transform_1(%arg0: i32) -> (i32, i32) {
    %c0_i32 = arith.constant 0 : i32
    %c0_i32_0 = arith.constant 0 : i32
    %c0_i32_1 = arith.constant 0 : i32
    return %c0_i32, %c0_i32_0 : i32, i32
  }
  func.func @transform_2(%arg0: i32) -> (i32, i32) {
    %c0_i32 = arith.constant 0 : i32
    %c0_i32_0 = arith.constant 0 : i32
    %c0_i32_1 = arith.constant 0 : i32
    return %c0_i32, %c0_i32_0 : i32, i32
  }
  func.func @transform_3(%arg0: i32) -> (i32, i32) {
    %c0_i32 = arith.constant 0 : i32
    %c0_i32_0 = arith.constant 0 : i32
    %c0_i32_1 = arith.constant 0 : i32
    return %c0_i32, %c0_i32_0 : i32, i32
  }
}

</mosaic_0001>

<llo_original>
// kernel: forward.1
$region0: #{forward.1}
  #allocation0 [shape = 'u32[]', space=smem, size = 0x4, offset = 0x4, fixed_abs, tag = 'smem constant byte address 0x4 - core index']
  #allocation1 [shape = 'u32[144,128]{1,0:T(1,128)}', space=vmem, size = 0x12000, scoped, tag = 'internal scratch']
  %s0 = inlined_call_operand.vmem [shape: f32[16,16], index: 0, kind: input, shape index: {}]
  %s1 = inlined_call_operand.vmem [shape: f32[16,4], index: 1, kind: input, shape index: {}]
  %s2 = inlined_call_operand.hbm [shape: f32[120,128], index: 2, kind: input, shape index: {}]
  %s3 = inlined_call_operand.vmem [shape: f32[16,128], index: 3, kind: output, shape index: {}]
  %s4 = sld [smem:[#allocation0]]
  $region26: #{forward.1} parent=0
    _
  %s6 = ssub.s32 1, %s4
  %s7 = scalar_select 0, %s6, %s4
  $region1: #{forward.1} parent=0
    #allocation2 [shape = 'u8[61440]{0}', space=vmem, size = 0xf000, scoped, tag = 'input window, operand 2, single buffered']
    #allocation3 [shape = 's32[1]{0}', space=sflag, size = 0x4, scoped, tag = 'scoped memory for forward.1']
    %8 = vsyncpa [#allocation3], 0
    // Predicated region
    $region2: #{forward.1} parent=1 // pred_check
      _
    $region3: #{forward.1} parent=1 // pred_check_branch
      %10 = sbr.rel (0) target = $region5
    $region4: #{forward.1} parent=1 // pred_region
      _
    $region5: #{forward.1} parent=1 // pred_fallthru
      _
    // Predicated region
    $region6: #{forward.1} parent=1 // pred_check
      _
    $region7: #{forward.1} parent=1 // pred_check_branch
      %12 = sbr.rel (0) target = $region9
    $region8: #{forward.1} parent=1 // pred_region
      _
    $region9: #{forward.1} parent=1 // pred_fallthru
      _
    // Predicated region
    $region10: #{forward.1} parent=1 // pred_check
      _
    $region11: #{forward.1} parent=1 // pred_check_branch
      %14 = sbr.rel (0) target = $region13
    $region12: #{forward.1} parent=1 // pred_region
      %s16 = ssub.s32 1920, 1920
      %17 = vsyncadd [#allocation3], %s16
      %s18 = sshll.u32 [#allocation2], 4
      %s19 = int_to_ptr.vmem [resolvable:$true] %s18
      %24 = dma.hbm_to_vmem [thread:$0]  %s2, 1920, %s19, [#allocation3], 128, 128, 8
    $region13: #{forward.1} parent=1 // pred_fallthru
      _
    // Predicated region
    $region14: #{forward.1} parent=1 // pred_check
      _
    $region15: #{forward.1} parent=1 // pred_check_branch
      %26 = sbr.rel (0) target = $region17
    $region16: #{forward.1} parent=1 // pred_region
      %27 = dma.done [#allocation3], 1920
    $region17: #{forward.1} parent=1 // pred_fallthru
      _
    %v28 = vld [vmem:[%s0] sm:$0xff]
    %v29 = vld [vmem:[%s0 + $0x8] sm:$0xff]
    %v30 = vld [vmem:[#allocation2] sm:$0xff]
    %v31 = vld [vmem:[#allocation2 + $0x8] sm:$0xff]
    %v32 = vld [vmem:[#allocation2 + $0x71] sm:$0x1]
    %v33 = vlaneseq
    %v34 = vshrl.u32 %v33, 7
    %v35 = vsub.s32 0, %v34
    %v36 = vrot.slane %v32, %v35
    %vm37 = vcmask 130048
    %v39 = vsel %vm37, %v28, 0
    %v42 = vsel %vm37, %v29, 0
    %44 = vmatprep.subr.mxu0 0.0
    %45 = vmatpush1.msra.mxu0 %v30
    %46 = vmatprep.subr.mxu0 0.0
    %47 = vmatpush1.msra.mxu0 %v31
    %48 = vmatprep.subr.mxu0 0.0
    %49 = vmatpush1.msra.mxu0 0.0
    %50 = vmatprep.subr.mxu0 0.0
    %51 = vmatpush1.msra.mxu0 0.0
    %52 = vmatprep.subr.mxu0 0.0
    %53 = vmatpush1.msra.mxu0 0.0
    %54 = vmatprep.subr.mxu0 0.0
    %55 = vmatpush1.msra.mxu0 0.0
    %56 = vmatprep.subr.mxu0 0.0
    %57 = vmatpush1.msra.mxu0 0.0
    %58 = vmatprep.subr.mxu0 0.0
    %59 = vmatpush1.msra.mxu0 0.0
    %60 = vmatprep.subr.mxu0 0.0
    %61 = vmatpush1.msra.mxu0 0.0
    %62 = vmatprep.subr.mxu0 0.0
    %63 = vmatpush1.msra.mxu0 0.0
    %64 = vmatprep.subr.mxu0 0.0
    %65 = vmatpush1.msra.mxu0 0.0
    %66 = vmatprep.subr.mxu0 0.0
    %67 = vmatpush1.msra.mxu0 0.0
    %68 = vmatprep.subr.mxu0 0.0
    %69 = vmatpush1.msra.mxu0 0.0
    %70 = vmatprep.subr.mxu0 0.0
    %71 = vmatpush1.msra.mxu0 0.0
    %72 = vmatprep.subr.mxu0 0.0
    %73 = vmatpush1.msra.mxu0 0.0
    %74 = vmatprep.subr.mxu0 0.0
    %75 = vmatpush1.msra.mxu0 0.0
    %76 = vmatprep.subr.mxu0 0.0
    %77 = vmatpush1.msra.mxu0 0.0
    %78 = vmatprep.subr.mxu0 0.0
    %79 = vmatpush1.msra.mxu0 0.0
    %80 = vmatprep.subr.mxu0 0.0
    %81 = vmatpush1.msra.mxu0 0.0
    %82 = vmatprep.subr.mxu0 0.0
    %83 = vmatpush1.msra.mxu0 0.0
    %84 = vmatprep.subr.mxu0 0.0
    %85 = vmatpush1.msra.mxu0 0.0
    %86 = vmatprep.subr.mxu0 0.0
    %87 = vmatpush1.msra.mxu0 0.0
    %88 = vmatprep.subr.mxu0 0.0
    %89 = vmatpush1.msra.mxu0 0.0
    %90 = vmatprep.subr.mxu0 0.0
    %91 = vmatpush1.msra.mxu0 0.0
    %92 = vmatprep.subr.mxu0 0.0
    %93 = vmatpush1.msra.mxu0 0.0
    %94 = vmatprep.subr.mxu0 0.0
    %95 = vmatpush1.msra.mxu0 0.0
    %96 = vmatprep.subr.mxu0 0.0
    %97 = vmatpush1.msra.mxu0 0.0
    %98 = vmatprep.subr.mxu0 0.0
    %99 = vmatpush1.msra.mxu0 0.0
    %100 = vmatprep.subr.mxu0 0.0
    %101 = vmatpush1.msra.mxu0 0.0
    %102 = vmatprep.subr.mxu0 0.0
    %103 = vmatpush1.msra.mxu0 0.0
    %104 = vmatprep.subr.mxu0 0.0
    %105 = vmatpush1.msra.mxu0 0.0
    %106 = vmatprep.subr.mxu0 0.0
    %107 = vmatpush1.msra.mxu0 0.0
    %108 = vmatprep.mubr.f32.mxu0 0.0
    %109 = vmatmul.mubr.f32.gmra.mrb[0].mxu0 %v39
    %v110 = vpop.f32.mrb[0].mxu0
    %v111 = vadd.f32 %v36, %v110
    %v112 = vpop.f32.mrb[0].mxu0
    %113 = vmatprep.mubr.f32.mxu0 0.0
    %114 = vmatmul.mubr.f32.gmra.mrb[0].mxu0 %v42
    %v115 = vpop.f32.mrb[0].mxu0
    %v116 = vadd.f32 %v36, %v115
    %v117 = vpop.f32.mrb[0].mxu0
    %118 = vdwg.mxu0
    %v119 = vmul.f32 %v111, 0.5
    %v120 = vmul.f32 %v116, 0.5
    %v121 = vmul.f32 %v119, 1.442695
    %v122 = vpow.pop %v121
    %v123 = vmul.f32 %v120, 1.442695
    %v124 = vpow.pop %v123
    %v125 = vmul.f32 %v122, %v122
    %v126 = vmul.f32 %v124, %v124
    %v127 = vld [vmem:[%s1] sm:$0xff]
    %v128 = vld [vmem:[%s1 + $0x8] sm:$0xff]
    %131 = vrot.lane.b32.xlu0 %v127, 4
    %v132 = vpop.permute.xlu0 %131
    %133 = vrot.lane.b32.xlu0 %v128, 4
    %v134 = vpop.permute.xlu0 %133
    %v137 = vmul.f32 %v122, %v132
    %v138 = vmul.f32 %v124, %v134
    %141 = vrot.lane.b32.xlu0 %v137, 124
    %v142 = vpop.permute.xlu0 %141
    %143 = vrot.lane.b32.xlu0 %v138, 124
    %v144 = vpop.permute.xlu0 %143
    %v147 = vadd.f32 %v111, %v142
    %v148 = vadd.f32 %v116, %v144
    %v149 = vadd.f32 %v111, 1.0
    %v150 = vadd.f32 %v116, 1.0
    %v151 = vmul.f32 %v111, %v111
    %v152 = vmul.f32 %v116, %v116
    %155 = vrot.lane.b32.xlu0 %v151, 4
    %v156 = vpop.permute.xlu0 %155
    %157 = vrot.lane.b32.xlu0 %v152, 4
    %v158 = vpop.permute.xlu0 %157
    %v161 = vsub.f32 %v149, %v156
    %v162 = vsub.f32 %v150, %v158
    %v163 = vsub.f32 %v161, %v125
    %v164 = vsub.f32 %v162, %v126
    %167 = vrot.lane.b32.xlu0 %v163, 124
    %v168 = vpop.permute.xlu0 %167
    %169 = vrot.lane.b32.xlu0 %v164, 124
    %v170 = vpop.permute.xlu0 %169
    %vm173 = vcmask 31744
    %v174 = vsel %vm173, %v168, 0.0
    %v175 = vsel %vm173, %v170, 0.0
    %v176 = vadd.f32 %v174, %v175
    %177 = vadd.xlane.f32.xlu0 %v176
    %v178 = vpop.xlane.xlu0 %177
    %v179 = vrot.slane %v178, 4
    %v180 = vadd.f32 %v178, %v179
    %v181 = vrot.slane %v180, 2
    %v182 = vadd.f32 %v180, %v181
    %v183 = vrot.slane %v182, 1
    %v184 = vadd.f32 %v182, %v183
    %s185 = vtos %v184
    %v186 = vstv %s185
    %v187 = vmul.f32 %v186, -0.5
    %v188 = vld [vmem:[#allocation2 + $0x20] sm:$0xff]
    %v189 = vld [vmem:[#allocation2 + $0x28] sm:$0xff]
    %v190 = vld [vmem:[#allocation2 + $0x30] sm:$0xff]
    %v191 = vld [vmem:[#allocation2 + $0x72] sm:$0x1]
    %v192 = vld [vmem:[#allocation2 + $0x73] sm:$0x1]
    %v193 = vld [vmem:[#allocation2 + $0x18] sm:$0xf]
    %v194 = vld [vmem:[#allocation2 + $0x38] sm:$0xff]
    %v195 = vld [vmem:[#allocation2 + $0x40] sm:$0xff]
    %v196 = vld [vmem:[#allocation2 + $0x48] sm:$0xff]
    %v197 = vld [vmem:[#allocation2 + $0x74] sm:$0x1]
    %v198 = vlaneseq
    %v199 = vshrl.u32 %v198, 7
    %v200 = vsub.s32 0, %v199
    %v201 = vrot.slane %v191, %v200
    %v203 = vsel %vm173, %v147, 0
    %v206 = vsel %vm173, %v148, 0
    %vm208 = vcmask 1043456
    %v210 = vsel %vm208, %v193, 0
    %212 = vmatprep.subr.mxu0 0.0
    %213 = vmatpush1.msra.mxu0 %v210
    %214 = vmatprep.subr.mxu0 0.0
    %215 = vmatpush1.msra.mxu0 0.0
    %216 = vmatprep.subr.mxu0 0.0
    %217 = vmatpush1.msra.mxu0 0.0
    %218 = vmatprep.subr.mxu0 0.0
    %219 = vmatpush1.msra.mxu0 0.0
    %220 = vmatprep.subr.mxu0 0.0
    %221 = vmatpush1.msra.mxu0 0.0
    %222 = vmatprep.subr.mxu0 0.0
    %223 = vmatpush1.msra.mxu0 0.0
    %224 = vmatprep.subr.mxu0 0.0
    %225 = vmatpush1.msra.mxu0 0.0
    %226 = vmatprep.subr.mxu0 0.0
    %227 = vmatpush1.msra.mxu0 0.0
    %228 = vmatprep.subr.mxu0 0.0
    %229 = vmatpush1.msra.mxu0 0.0
    %230 = vmatprep.subr.mxu0 0.0
    %231 = vmatpush1.msra.mxu0 0.0
    %232 = vmatprep.subr.mxu0 0.0
    %233 = vmatpush1.msra.mxu0 0.0
    %234 = vmatprep.subr.mxu0 0.0
    %235 = vmatpush1.msra.mxu0 0.0
    %236 = vmatprep.subr.mxu0 0.0
    %237 = vmatpush1.msra.mxu0 0.0
    %238 = vmatprep.subr.mxu0 0.0
    %239 = vmatpush1.msra.mxu0 0.0
    %240 = vmatprep.subr.mxu0 0.0
    %241 = vmatpush1.msra.mxu0 0.0
    %242 = vmatprep.subr.mxu0 0.0
    %243 = vmatpush1.msra.mxu0 0.0
    %244 = vmatprep.subr.mxu0 0.0
    %245 = vmatpush1.msra.mxu0 0.0
    %246 = vmatprep.subr.mxu0 0.0
    %247 = vmatpush1.msra.mxu0 0.0
    %248 = vmatprep.subr.mxu0 0.0
    %249 = vmatpush1.msra.mxu0 0.0
    %250 = vmatprep.subr.mxu0 0.0
    %251 = vmatpush1.msra.mxu0 0.0
    %252 = vmatprep.subr.mxu0 0.0
    %253 = vmatpush1.msra.mxu0 0.0
    %254 = vmatprep.subr.mxu0 0.0
    %255 = vmatpush1.msra.mxu0 0.0
    %256 = vmatprep.subr.mxu0 0.0
    %257 = vmatpush1.msra.mxu0 0.0
    %258 = vmatprep.subr.mxu0 0.0
    %259 = vmatpush1.msra.mxu0 0.0
    %260 = vmatprep.subr.mxu0 0.0
    %261 = vmatpush1.msra.mxu0 0.0
    %262 = vmatprep.subr.mxu0 0.0
    %263 = vmatpush1.msra.mxu0 0.0
    %264 = vmatprep.subr.mxu0 0.0
    %265 = vmatpush1.msra.mxu0 0.0
    %266 = vmatprep.subr.mxu0 0.0
    %267 = vmatpush1.msra.mxu0 0.0
    %268 = vmatprep.subr.mxu0 0.0
    %269 = vmatpush1.msra.mxu0 0.0
    %270 = vmatprep.subr.mxu0 0.0
    %271 = vmatpush1.msra.mxu0 0.0
    %272 = vmatprep.subr.mxu0 0.0
    %273 = vmatpush1.msra.mxu0 0.0
    %274 = vmatprep.subr.mxu0 0.0
    %275 = vmatpush1.msra.mxu0 0.0
    %276 = vmatprep.mubr.f32.mxu0 0.0
    %277 = vmatmul.mubr.f32.gmra.mrb[0].mxu0 %v203
    %v278 = vpop.f32.mrb[0].mxu0
    %v279 = vadd.f32 %v201, %v278
    %v280 = vpop.f32.mrb[0].mxu0
    %281 = vmatprep.mubr.f32.mxu0 0.0
    %282 = vmatmul.mubr.f32.gmra.mrb[0].mxu0 %v206
    %v283 = vpop.f32.mrb[0].mxu0
    %v284 = vadd.f32 %v201, %v283
    %v285 = vpop.f32.mrb[0].mxu0
    %286 = vdwg.mxu0
    %v287 = vtanh.pop %v279
    %v288 = vtanh.pop %v284
    %v289 = vlaneseq
    %v290 = vshrl.u32 %v289, 7
    %v291 = vsub.s32 0, %v290
    %v292 = vrot.slane %v192, %v291
    %vm293 = vcmask 195584
    %v295 = vsel %vm293, %v287, 0
    %v298 = vsel %vm293, %v288, 0
    %300 = vmatprep.subr.mxu0 0.0
    %301 = vmatpush1.msra.mxu0 %v188
    %302 = vmatprep.subr.mxu0 0.0
    %303 = vmatpush1.msra.mxu0 %v189
    %304 = vmatprep.subr.mxu0 0.0
    %305 = vmatpush1.msra.mxu0 %v190
    %306 = vmatprep.subr.mxu0 0.0
    %307 = vmatpush1.msra.mxu0 0.0
    %308 = vmatprep.subr.mxu0 0.0
    %309 = vmatpush1.msra.mxu0 0.0
    %310 = vmatprep.subr.mxu0 0.0
    %311 = vmatpush1.msra.mxu0 0.0
    %312 = vmatprep.subr.mxu0 0.0
    %313 = vmatpush1.msra.mxu0 0.0
    %314 = vmatprep.subr.mxu0 0.0
    %315 = vmatpush1.msra.mxu0 0.0
    %316 = vmatprep.subr.mxu0 0.0
    %317 = vmatpush1.msra.mxu0 0.0
    %318 = vmatprep.subr.mxu0 0.0
    %319 = vmatpush1.msra.mxu0 0.0
    %320 = vmatprep.subr.mxu0 0.0
    %321 = vmatpush1.msra.mxu0 0.0
    %322 = vmatprep.subr.mxu0 0.0
    %323 = vmatpush1.msra.mxu0 0.0
    %324 = vmatprep.subr.mxu0 0.0
    %325 = vmatpush1.msra.mxu0 0.0
    %326 = vmatprep.subr.mxu0 0.0
    %327 = vmatpush1.msra.mxu0 0.0
    %328 = vmatprep.subr.mxu0 0.0
    %329 = vmatpush1.msra.mxu0 0.0
    %330 = vmatprep.subr.mxu0 0.0
    %331 = vmatpush1.msra.mxu0 0.0
    %332 = vmatprep.subr.mxu0 0.0
    %333 = vmatpush1.msra.mxu0 0.0
    %334 = vmatprep.subr.mxu0 0.0
    %335 = vmatpush1.msra.mxu0 0.0
    %336 = vmatprep.subr.mxu0 0.0
    %337 = vmatpush1.msra.mxu0 0.0
    %338 = vmatprep.subr.mxu0 0.0
    %339 = vmatpush1.msra.mxu0 0.0
    %340 = vmatprep.subr.mxu0 0.0
    %341 = vmatpush1.msra.mxu0 0.0
    %342 = vmatprep.subr.mxu0 0.0
    %343 = vmatpush1.msra.mxu0 0.0
    %344 = vmatprep.subr.mxu0 0.0
    %345 = vmatpush1.msra.mxu0 0.0
    %346 = vmatprep.subr.mxu0 0.0
    %347 = vmatpush1.msra.mxu0 0.0
    %348 = vmatprep.subr.mxu0 0.0
    %349 = vmatpush1.msra.mxu0 0.0
    %350 = vmatprep.subr.mxu0 0.0
    %351 = vmatpush1.msra.mxu0 0.0
    %352 = vmatprep.subr.mxu0 0.0
    %353 = vmatpush1.msra.mxu0 0.0
    %354 = vmatprep.subr.mxu0 0.0
    %355 = vmatpush1.msra.mxu0 0.0
    %356 = vmatprep.subr.mxu0 0.0
    %357 = vmatpush1.msra.mxu0 0.0
    %358 = vmatprep.subr.mxu0 0.0
    %359 = vmatpush1.msra.mxu0 0.0
    %360 = vmatprep.subr.mxu0 0.0
    %361 = vmatpush1.msra.mxu0 0.0
    %362 = vmatprep.subr.mxu0 0.0
    %363 = vmatpush1.msra.mxu0 0.0
    %364 = vmatprep.mubr.f32.mxu0 0.0
    %365 = vmatmul.mubr.f32.gmra.mrb[0].mxu0 %v295
    %v366 = vpop.f32.mrb[0].mxu0
    %v367 = vadd.f32 %v292, %v366
    %v368 = vpop.f32.mrb[0].mxu0
    %369 = vmatprep.mubr.f32.mxu0 0.0
    %370 = vmatmul.mubr.f32.gmra.mrb[0].mxu0 %v298
    %v371 = vpop.f32.mrb[0].mxu0
    %v372 = vadd.f32 %v292, %v371
    %v373 = vpop.f32.mrb[0].mxu0
    %374 = vdwg.mxu0
    %v375 = vtanh.pop %v367
    %v376 = vtanh.pop %v372
    %v377 = vlaneseq
    %v378 = vshrl.u32 %v377, 7
    %v379 = vsub.s32 0, %v378
    %v380 = vrot.slane %v197, %v379
    %v382 = vsel %vm293, %v375, 0
    %v385 = vsel %vm293, %v376, 0
    %387 = vmatprep.subr.mxu0 0.0
    %388 = vmatpush1.msra.mxu0 %v194
    %389 = vmatprep.subr.mxu0 0.0
    %390 = vmatpush1.msra.mxu0 %v195
    %391 = vmatprep.subr.mxu0 0.0
    %392 = vmatpush1.msra.mxu0 %v196
    %393 = vmatprep.subr.mxu0 0.0
    %394 = vmatpush1.msra.mxu0 0.0
    %395 = vmatprep.subr.mxu0 0.0
    %396 = vmatpush1.msra.mxu0 0.0
    %397 = vmatprep.subr.mxu0 0.0
    %398 = vmatpush1.msra.mxu0 0.0
    %399 = vmatprep.subr.mxu0 0.0
    %400 = vmatpush1.msra.mxu0 0.0
    %401 = vmatprep.subr.mxu0 0.0
    %402 = vmatpush1.msra.mxu0 0.0
    %403 = vmatprep.subr.mxu0 0.0
    %404 = vmatpush1.msra.mxu0 0.0
    %405 = vmatprep.subr.mxu0 0.0
    %406 = vmatpush1.msra.mxu0 0.0
    %407 = vmatprep.subr.mxu0 0.0
    %408 = vmatpush1.msra.mxu0 0.0
    %409 = vmatprep.subr.mxu0 0.0
    %410 = vmatpush1.msra.mxu0 0.0
    %411 = vmatprep.subr.mxu0 0.0
    %412 = vmatpush1.msra.mxu0 0.0
    %413 = vmatprep.subr.mxu0 0.0
    %414 = vmatpush1.msra.mxu0 0.0
    %415 = vmatprep.subr.mxu0 0.0
    %416 = vmatpush1.msra.mxu0 0.0
    %417 = vmatprep.subr.mxu0 0.0
    %418 = vmatpush1.msra.mxu0 0.0
    %419 = vmatprep.subr.mxu0 0.0
    %420 = vmatpush1.msra.mxu0 0.0
    %421 = vmatprep.subr.mxu0 0.0
    %422 = vmatpush1.msra.mxu0 0.0
    %423 = vmatprep.subr.mxu0 0.0
    %424 = vmatpush1.msra.mxu0 0.0
    %425 = vmatprep.subr.mxu0 0.0
    %426 = vmatpush1.msra.mxu0 0.0
    %427 = vmatprep.subr.mxu0 0.0
    %428 = vmatpush1.msra.mxu0 0.0
    %429 = vmatprep.subr.mxu0 0.0
    %430 = vmatpush1.msra.mxu0 0.0
    %431 = vmatprep.subr.mxu0 0.0
    %432 = vmatpush1.msra.mxu0 0.0
    %433 = vmatprep.subr.mxu0 0.0
    %434 = vmatpush1.msra.mxu0 0.0
    %435 = vmatprep.subr.mxu0 0.0
    %436 = vmatpush1.msra.mxu0 0.0
    %437 = vmatprep.subr.mxu0 0.0
    %438 = vmatpush1.msra.mxu0 0.0
    %439 = vmatprep.subr.mxu0 0.0
    %440 = vmatpush1.msra.mxu0 0.0
    %441 = vmatprep.subr.mxu0 0.0
    %442 = vmatpush1.msra.mxu0 0.0
    %443 = vmatprep.subr.mxu0 0.0
    %444 = vmatpush1.msra.mxu0 0.0
    %445 = vmatprep.subr.mxu0 0.0
    %446 = vmatpush1.msra.mxu0 0.0
    %447 = vmatprep.subr.mxu0 0.0
    %448 = vmatpush1.msra.mxu0 0.0
    %449 = vmatprep.subr.mxu0 0.0
    %450 = vmatpush1.msra.mxu0 0.0
    %451 = vmatprep.mubr.f32.mxu0 0.0
    %452 = vmatmul.mubr.f32.gmra.mrb[0].mxu0 %v382
    %v453 = vpop.f32.mrb[0].mxu0
    %v454 = vadd.f32 %v380, %v453
    %v455 = vpop.f32.mrb[0].mxu0
    %456 = vmatprep.mubr.f32.mxu0 0.0
    %457 = vmatmul.mubr.f32.gmra.mrb[0].mxu0 %v385
    %v458 = vpop.f32.mrb[0].mxu0
    %v459 = vadd.f32 %v380, %v458
    %v460 = vpop.f32.mrb[0].mxu0
    %461 = vdwg.mxu0
    %v462 = vsub.f32 %v147, %v454
    %v463 = vsub.f32 %v148, %v459
    %v464 = vsub.f32 0.0, %v454
    %v465 = vsub.f32 0.0, %v459
    %v466 = vmul.f32 %v464, 1.442695
    %v467 = vpow.pop %v466
    %v468 = vmul.f32 %v465, 1.442695
    %v469 = vpow.pop %v468
    %472 = vrot.lane.b32.xlu0 %v467, 124
    %v473 = vpop.permute.xlu0 %472
    %474 = vrot.lane.b32.xlu0 %v469, 124
    %v475 = vpop.permute.xlu0 %474
    %v478 = vmul.f32 %v462, %v473
    %v479 = vmul.f32 %v463, %v475
    %v480 = vadd.f32 %v454, 0.0
    %v481 = vadd.f32 %v459, 0.0
    %v482 = vld [vmem:[#allocation2 + $0x50] sm:$0xf]
    %v483 = vld [vmem:[#allocation2 + $0x58] sm:$0xff]
    %v484 = vld [vmem:[#allocation2 + $0x60] sm:$0xff]
    %v485 = vld [vmem:[#allocation2 + $0x68] sm:$0xff]
    %v486 = vld [vmem:[#allocation2 + $0x75] sm:$0x1]
    %v488 = vsel %vm173, %v478, 0
    %v491 = vsel %vm173, %v479, 0
    %v494 = vsel %vm208, %v482, 0
    %496 = vmatprep.subr.mxu0 0.0
    %497 = vmatpush1.msra.mxu0 %v494
    %498 = vmatprep.subr.mxu0 0.0
    %499 = vmatpush1.msra.mxu0 0.0
    %500 = vmatprep.subr.mxu0 0.0
    %501 = vmatpush1.msra.mxu0 0.0
    %502 = vmatprep.subr.mxu0 0.0
    %503 = vmatpush1.msra.mxu0 0.0
    %504 = vmatprep.subr.mxu0 0.0
    %505 = vmatpush1.msra.mxu0 0.0
    %506 = vmatprep.subr.mxu0 0.0
    %507 = vmatpush1.msra.mxu0 0.0
    %508 = vmatprep.subr.mxu0 0.0
    %509 = vmatpush1.msra.mxu0 0.0
    %510 = vmatprep.subr.mxu0 0.0
    %511 = vmatpush1.msra.mxu0 0.0
    %512 = vmatprep.subr.mxu0 0.0
    %513 = vmatpush1.msra.mxu0 0.0
    %514 = vmatprep.subr.mxu0 0.0
    %515 = vmatpush1.msra.mxu0 0.0
    %516 = vmatprep.subr.mxu0 0.0
    %517 = vmatpush1.msra.mxu0 0.0
    %518 = vmatprep.subr.mxu0 0.0
    %519 = vmatpush1.msra.mxu0 0.0
    %520 = vmatprep.subr.mxu0 0.0
    %521 = vmatpush1.msra.mxu0 0.0
    %522 = vmatprep.subr.mxu0 0.0
    %523 = vmatpush1.msra.mxu0 0.0
    %524 = vmatprep.subr.mxu0 0.0
    %525 = vmatpush1.msra.mxu0 0.0
    %526 = vmatprep.subr.mxu0 0.0
    %527 = vmatpush1.msra.mxu0 0.0
    %528 = vmatprep.subr.mxu0 0.0
    %529 = vmatpush1.msra.mxu0 0.0
    %530 = vmatprep.subr.mxu0 0.0
    %531 = vmatpush1.msra.mxu0 0.0
    %532 = vmatprep.subr.mxu0 0.0
    %533 = vmatpush1.msra.mxu0 0.0
    %534 = vmatprep.subr.mxu0 0.0
    %535 = vmatpush1.msra.mxu0 0.0
    %536 = vmatprep.subr.mxu0 0.0
    %537 = vmatpush1.msra.mxu0 0.0
    %538 = vmatprep.subr.mxu0 0.0
    %539 = vmatpush1.msra.mxu0 0.0
    %540 = vmatprep.subr.mxu0 0.0
    %541 = vmatpush1.msra.mxu0 0.0
    %542 = vmatprep.subr.mxu0 0.0
    %543 = vmatpush1.msra.mxu0 0.0
    %544 = vmatprep.subr.mxu0 0.0
    %545 = vmatpush1.msra.mxu0 0.0
    %546 = vmatprep.subr.mxu0 0.0
    %547 = vmatpush1.msra.mxu0 0.0
    %548 = vmatprep.subr.mxu0 0.0
    %549 = vmatpush1.msra.mxu0 0.0
    %550 = vmatprep.subr.mxu0 0.0
    %551 = vmatpush1.msra.mxu0 0.0
    %552 = vmatprep.subr.mxu0 0.0
    %553 = vmatpush1.msra.mxu0 0.0
    %554 = vmatprep.subr.mxu0 0.0
    %555 = vmatpush1.msra.mxu0 0.0
    %556 = vmatprep.subr.mxu0 0.0
    %557 = vmatpush1.msra.mxu0 0.0
    %558 = vmatprep.subr.mxu0 0.0
    %559 = vmatpush1.msra.mxu0 0.0
    %560 = vmatprep.mubr.f32.mxu0 0.0
    %561 = vmatmul.mubr.f32.gmra.mrb[0].mxu0 %v488
    %v562 = vpop.f32.mrb[0].mxu0
    %v563 = vadd.f32 %v201, %v562
    %v564 = vpop.f32.mrb[0].mxu0
    %565 = vmatprep.mubr.f32.mxu0 0.0
    %566 = vmatmul.mubr.f32.gmra.mrb[0].mxu0 %v491
    %v567 = vpop.f32.mrb[0].mxu0
    %v568 = vadd.f32 %v201, %v567
    %v569 = vpop.f32.mrb[0].mxu0
    %570 = vdwg.mxu0
    %v571 = vtanh.pop %v563
    %v572 = vtanh.pop %v568
    %v574 = vsel %vm293, %v571, 0
    %v577 = vsel %vm293, %v572, 0
    %579 = vmatprep.subr.mxu0 0.0
    %580 = vmatpush1.msra.mxu0 %v188
    %581 = vmatprep.subr.mxu0 0.0
    %582 = vmatpush1.msra.mxu0 %v189
    %583 = vmatprep.subr.mxu0 0.0
    %584 = vmatpush1.msra.mxu0 %v190
    %585 = vmatprep.subr.mxu0 0.0
    %586 = vmatpush1.msra.mxu0 0.0
    %587 = vmatprep.subr.mxu0 0.0
    %588 = vmatpush1.msra.mxu0 0.0
    %589 = vmatprep.subr.mxu0 0.0
    %590 = vmatpush1.msra.mxu0 0.0
    %591 = vmatprep.subr.mxu0 0.0
    %592 = vmatpush1.msra.mxu0 0.0
    %593 = vmatprep.subr.mxu0 0.0
    %594 = vmatpush1.msra.mxu0 0.0
    %595 = vmatprep.subr.mxu0 0.0
    %596 = vmatpush1.msra.mxu0 0.0
    %597 = vmatprep.subr.mxu0 0.0
    %598 = vmatpush1.msra.mxu0 0.0
    %599 = vmatprep.subr.mxu0 0.0
    %600 = vmatpush1.msra.mxu0 0.0
    %601 = vmatprep.subr.mxu0 0.0
    %602 = vmatpush1.msra.mxu0 0.0
    %603 = vmatprep.subr.mxu0 0.0
    %604 = vmatpush1.msra.mxu0 0.0
    %605 = vmatprep.subr.mxu0 0.0
    %606 = vmatpush1.msra.mxu0 0.0
    %607 = vmatprep.subr.mxu0 0.0
    %608 = vmatpush1.msra.mxu0 0.0
    %609 = vmatprep.subr.mxu0 0.0
    %610 = vmatpush1.msra.mxu0 0.0
    %611 = vmatprep.subr.mxu0 0.0
    %612 = vmatpush1.msra.mxu0 0.0
    %613 = vmatprep.subr.mxu0 0.0
    %614 = vmatpush1.msra.mxu0 0.0
    %615 = vmatprep.subr.mxu0 0.0
    %616 = vmatpush1.msra.mxu0 0.0
    %617 = vmatprep.subr.mxu0 0.0
    %618 = vmatpush1.msra.mxu0 0.0
    %619 = vmatprep.subr.mxu0 0.0
    %620 = vmatpush1.msra.mxu0 0.0
    %621 = vmatprep.subr.mxu0 0.0
    %622 = vmatpush1.msra.mxu0 0.0
    %623 = vmatprep.subr.mxu0 0.0
    %624 = vmatpush1.msra.mxu0 0.0
    %625 = vmatprep.subr.mxu0 0.0
    %626 = vmatpush1.msra.mxu0 0.0
    %627 = vmatprep.subr.mxu0 0.0
    %628 = vmatpush1.msra.mxu0 0.0
    %629 = vmatprep.subr.mxu0 0.0
    %630 = vmatpush1.msra.mxu0 0.0
    %631 = vmatprep.subr.mxu0 0.0
    %632 = vmatpush1.msra.mxu0 0.0
    %633 = vmatprep.subr.mxu0 0.0
    %634 = vmatpush1.msra.mxu0 0.0
    %635 = vmatprep.subr.mxu0 0.0
    %636 = vmatpush1.msra.mxu0 0.0
    %637 = vmatprep.subr.mxu0 0.0
    %638 = vmatpush1.msra.mxu0 0.0
    %639 = vmatprep.subr.mxu0 0.0
    %640 = vmatpush1.msra.mxu0 0.0
    %641 = vmatprep.subr.mxu0 0.0
    %642 = vmatpush1.msra.mxu0 0.0
    %643 = vmatprep.mubr.f32.mxu0 0.0
    %644 = vmatmul.mubr.f32.gmra.mrb[0].mxu0 %v574
    %v645 = vpop.f32.mrb[0].mxu0
    %v646 = vadd.f32 %v292, %v645
    %v647 = vpop.f32.mrb[0].mxu0
    %648 = vmatprep.mubr.f32.mxu0 0.0
    %649 = vmatmul.mubr.f32.gmra.mrb[0].mxu0 %v577
    %v650 = vpop.f32.mrb[0].mxu0
    %v651 = vadd.f32 %v292, %v650
    %v652 = vpop.f32.mrb[0].mxu0
    %653 = vdwg.mxu0
    %v654 = vtanh.pop %v646
    %v655 = vtanh.pop %v651
    %v656 = vlaneseq
    %v657 = vshrl.u32 %v656, 7
    %v658 = vsub.s32 0, %v657
    %v659 = vrot.slane %v486, %v658
    %v661 = vsel %vm293, %v654, 0
    %v664 = vsel %vm293, %v655, 0
    %666 = vmatprep.subr.mxu0 0.0
    %667 = vmatpush1.msra.mxu0 %v483
    %668 = vmatprep.subr.mxu0 0.0
    %669 = vmatpush1.msra.mxu0 %v484
    %670 = vmatprep.subr.mxu0 0.0
    %671 = vmatpush1.msra.mxu0 %v485
    %672 = vmatprep.subr.mxu0 0.0
    %673 = vmatpush1.msra.mxu0 0.0
    %674 = vmatprep.subr.mxu0 0.0
    %675 = vmatpush1.msra.mxu0 0.0
    %676 = vmatprep.subr.mxu0 0.0
    %677 = vmatpush1.msra.mxu0 0.0
    %678 = vmatprep.subr.mxu0 0.0
    %679 = vmatpush1.msra.mxu0 0.0
    %680 = vmatprep.subr.mxu0 0.0
    %681 = vmatpush1.msra.mxu0 0.0
    %682 = vmatprep.subr.mxu0 0.0
    %683 = vmatpush1.msra.mxu0 0.0
    %684 = vmatprep.subr.mxu0 0.0
    %685 = vmatpush1.msra.mxu0 0.0
    %686 = vmatprep.subr.mxu0 0.0
    %687 = vmatpush1.msra.mxu0 0.0
    %688 = vmatprep.subr.mxu0 0.0
    %689 = vmatpush1.msra.mxu0 0.0
    %690 = vmatprep.subr.mxu0 0.0
    %691 = vmatpush1.msra.mxu0 0.0
    %692 = vmatprep.subr.mxu0 0.0
    %693 = vmatpush1.msra.mxu0 0.0
    %694 = vmatprep.subr.mxu0 0.0
    %695 = vmatpush1.msra.mxu0 0.0
    %696 = vmatprep.subr.mxu0 0.0
    %697 = vmatpush1.msra.mxu0 0.0
    %698 = vmatprep.subr.mxu0 0.0
    %699 = vmatpush1.msra.mxu0 0.0
    %700 = vmatprep.subr.mxu0 0.0
    %701 = vmatpush1.msra.mxu0 0.0
    %702 = vmatprep.subr.mxu0 0.0
    %703 = vmatpush1.msra.mxu0 0.0
    %704 = vmatprep.subr.mxu0 0.0
    %705 = vmatpush1.msra.mxu0 0.0
    %706 = vmatprep.subr.mxu0 0.0
    %707 = vmatpush1.msra.mxu0 0.0
    %708 = vmatprep.subr.mxu0 0.0
    %709 = vmatpush1.msra.mxu0 0.0
    %710 = vmatprep.subr.mxu0 0.0
    %711 = vmatpush1.msra.mxu0 0.0
    %712 = vmatprep.subr.mxu0 0.0
    %713 = vmatpush1.msra.mxu0 0.0
    %714 = vmatprep.subr.mxu0 0.0
    %715 = vmatpush1.msra.mxu0 0.0
    %716 = vmatprep.subr.mxu0 0.0
    %717 = vmatpush1.msra.mxu0 0.0
    %718 = vmatprep.subr.mxu0 0.0
    %719 = vmatpush1.msra.mxu0 0.0
    %720 = vmatprep.subr.mxu0 0.0
    %721 = vmatpush1.msra.mxu0 0.0
    %722 = vmatprep.subr.mxu0 0.0
    %723 = vmatpush1.msra.mxu0 0.0
    %724 = vmatprep.subr.mxu0 0.0
    %725 = vmatpush1.msra.mxu0 0.0
    %726 = vmatprep.subr.mxu0 0.0
    %727 = vmatpush1.msra.mxu0 0.0
    %728 = vmatprep.subr.mxu0 0.0
    %729 = vmatpush1.msra.mxu0 0.0
    %730 = vmatprep.mubr.f32.mxu0 0.0
    %731 = vmatmul.mubr.f32.gmra.mrb[0].mxu0 %v661
    %v732 = vpop.f32.mrb[0].mxu0
    %v733 = vadd.f32 %v659, %v732
    %v734 = vpop.f32.mrb[0].mxu0
    %735 = vmatprep.mubr.f32.mxu0 0.0
    %736 = vmatmul.mubr.f32.gmra.mrb[0].mxu0 %v664
    %v737 = vpop.f32.mrb[0].mxu0
    %v738 = vadd.f32 %v659, %v737
    %v739 = vpop.f32.mrb[0].mxu0
    %740 = vdwg.mxu0
    %v741 = vsub.f32 %v478, %v733
    %v742 = vsub.f32 %v479, %v738
    %v743 = vsub.f32 0.0, %v733
    %v744 = vsub.f32 0.0, %v738
    %v745 = vmul.f32 %v743, 1.442695
    %v746 = vpow.pop %v745
    %v747 = vmul.f32 %v744, 1.442695
    %v748 = vpow.pop %v747
    %751 = vrot.lane.b32.xlu0 %v746, 124
    %v752 = vpop.permute.xlu0 %751
    %753 = vrot.lane.b32.xlu0 %v748, 124
    %v754 = vpop.permute.xlu0 %753
    %v757 = vmul.f32 %v741, %v752
    %v758 = vmul.f32 %v742, %v754
    %v759 = vadd.f32 %v480, %v733
    %v760 = vadd.f32 %v481, %v738
    %v761 = vld [vmem:[#allocation2 + $0x10] sm:$0xf]
    %v762 = vld [vmem:[#allocation2 + $0x70] sm:$0x1]
    %v763 = vlaneseq
    %v764 = vshrl.u32 %v763, 7
    %v765 = vsub.s32 0, %v764
    %v766 = vrot.slane %v762, %v765
    %v768 = vsel %vm173, %v757, 0
    %v771 = vsel %vm173, %v758, 0
    %v774 = vsel %vm208, %v761, 0
    %776 = vmatprep.subr.mxu0 0.0
    %777 = vmatpush1.msra.mxu0 %v774
    %778 = vmatprep.subr.mxu0 0.0
    %779 = vmatpush1.msra.mxu0 0.0
    %780 = vmatprep.subr.mxu0 0.0
    %781 = vmatpush1.msra.mxu0 0.0
    %782 = vmatprep.subr.mxu0 0.0
    %783 = vmatpush1.msra.mxu0 0.0
    %784 = vmatprep.subr.mxu0 0.0
    %785 = vmatpush1.msra.mxu0 0.0
    %786 = vmatprep.subr.mxu0 0.0
    %787 = vmatpush1.msra.mxu0 0.0
    %788 = vmatprep.subr.mxu0 0.0
    %789 = vmatpush1.msra.mxu0 0.0
    %790 = vmatprep.subr.mxu0 0.0
    %791 = vmatpush1.msra.mxu0 0.0
    %792 = vmatprep.subr.mxu0 0.0
    %793 = vmatpush1.msra.mxu0 0.0
    %794 = vmatprep.subr.mxu0 0.0
    %795 = vmatpush1.msra.mxu0 0.0
    %796 = vmatprep.subr.mxu0 0.0
    %797 = vmatpush1.msra.mxu0 0.0
    %798 = vmatprep.subr.mxu0 0.0
    %799 = vmatpush1.msra.mxu0 0.0
    %800 = vmatprep.subr.mxu0 0.0
    %801 = vmatpush1.msra.mxu0 0.0
    %802 = vmatprep.subr.mxu0 0.0
    %803 = vmatpush1.msra.mxu0 0.0
    %804 = vmatprep.subr.mxu0 0.0
    %805 = vmatpush1.msra.mxu0 0.0
    %806 = vmatprep.subr.mxu0 0.0
    %807 = vmatpush1.msra.mxu0 0.0
    %808 = vmatprep.subr.mxu0 0.0
    %809 = vmatpush1.msra.mxu0 0.0
    %810 = vmatprep.subr.mxu0 0.0
    %811 = vmatpush1.msra.mxu0 0.0
    %812 = vmatprep.subr.mxu0 0.0
    %813 = vmatpush1.msra.mxu0 0.0
    %814 = vmatprep.subr.mxu0 0.0
    %815 = vmatpush1.msra.mxu0 0.0
    %816 = vmatprep.subr.mxu0 0.0
    %817 = vmatpush1.msra.mxu0 0.0
    %818 = vmatprep.subr.mxu0 0.0
    %819 = vmatpush1.msra.mxu0 0.0
    %820 = vmatprep.subr.mxu0 0.0
    %821 = vmatpush1.msra.mxu0 0.0
    %822 = vmatprep.subr.mxu0 0.0
    %823 = vmatpush1.msra.mxu0 0.0
    %824 = vmatprep.subr.mxu0 0.0
    %825 = vmatpush1.msra.mxu0 0.0
    %826 = vmatprep.subr.mxu0 0.0
    %827 = vmatpush1.msra.mxu0 0.0
    %828 = vmatprep.subr.mxu0 0.0
    %829 = vmatpush1.msra.mxu0 0.0
    %830 = vmatprep.subr.mxu0 0.0
    %831 = vmatpush1.msra.mxu0 0.0
    %832 = vmatprep.subr.mxu0 0.0
    %833 = vmatpush1.msra.mxu0 0.0
    %834 = vmatprep.subr.mxu0 0.0
    %835 = vmatpush1.msra.mxu0 0.0
    %836 = vmatprep.subr.mxu0 0.0
    %837 = vmatpush1.msra.mxu0 0.0
    %838 = vmatprep.subr.mxu0 0.0
    %839 = vmatpush1.msra.mxu0 0.0
    %840 = vmatprep.mubr.f32.mxu0 0.0
    %841 = vmatmul.mubr.f32.gmra.mrb[0].mxu0 %v768
    %v842 = vpop.f32.mrb[0].mxu0
    %v843 = vadd.f32 %v766, %v842
    %v844 = vpop.f32.mrb[0].mxu0
    %845 = vmatprep.mubr.f32.mxu0 0.0
    %846 = vmatmul.mubr.f32.gmra.mrb[0].mxu0 %v771
    %v847 = vpop.f32.mrb[0].mxu0
    %v848 = vadd.f32 %v766, %v847
    %v849 = vpop.f32.mrb[0].mxu0
    %850 = vdwg.mxu0
    %853 = vrot.lane.b32.xlu0 %v759, 124
    %v854 = vpop.permute.xlu0 %853
    %855 = vrot.lane.b32.xlu0 %v760, 124
    %v856 = vpop.permute.xlu0 %855
    %v859 = vsel %vm173, %v854, 0.0
    %v860 = vsel %vm173, %v856, 0.0
    %v861 = vadd.f32 %v859, %v860
    %862 = vadd.xlane.f32.xlu0 %v861
    %v863 = vpop.xlane.xlu0 %862
    %v864 = vrot.slane %v863, 4
    %v865 = vadd.f32 %v863, %v864
    %v866 = vrot.slane %v865, 2
    %v867 = vadd.f32 %v865, %v866
    %v868 = vrot.slane %v867, 1
    %v869 = vadd.f32 %v867, %v868
    %s870 = vtos %v869
    %v871 = vstv %s870
    %v872 = vadd.f32 %v187, %v871
    %v873 = vmul.f32 %v872, 0.0625
    %v874 = vlaneseq
    %v875 = vand.u32 %v874, 127
    %vm876 = vcmp.eq.s32.totalorder %v875, 16
    %v877 = vsel %vm876, %v873, 0.0
    %v878 = vadd.f32 %v843, %v877
    %v879 = vadd.f32 %v848, %v877
    %880 = vst [vmem:[%s3] sm:$0xff] %v878
    %881 = vst [vmem:[%s3 + $0x8] sm:$0xff] %v879
    // Predicated region
    $region18: #{forward.1} parent=1 // pred_check
      _
    $region19: #{forward.1} parent=1 // pred_check_branch
      %883 = sbr.rel (0) target = $region21
    $region20: #{forward.1} parent=1 // pred_region
      _
    $region21: #{forward.1} parent=1 // pred_fallthru
      _
    // Predicated region
    $region22: #{forward.1} parent=1 // pred_check
      _
    $region23: #{forward.1} parent=1 // pred_check_branch
      %885 = sbr.rel (0) target = $region25
    $region24: #{forward.1} parent=1 // pred_region
      _
    $region25: #{forward.1} parent=1 // pred_fallthru
      _
    %886 = vsyncpa [#allocation3], 1

</llo_original>
